<compile_context>
chip_gen: v7x
topology: tpu7x:2x2x1
jax: 0.10.0
libtpu: 0.0.40
codegen_flags: <defaults>
</compile_context>

<pallas_src>
import jax
import jax.numpy as jnp
from jax.experimental import pallas as pl
from jax.experimental.pallas import tpu as pltpu


# ----------------------------- kernel body ----------------------------------


def _make_skfusion_kernel(height, bulk_dtype, use_mxu):
    def kernel(w1_ref, w2_ref, *rest):
        x_refs = rest[:height]
        o_ref = rest[height]
        _, C, _ = x_refs[0].shape

        # --- pooled stats: streaming per-branch lane mean (no feats_sum temp).
        # mean_h over HW of sum_h(x) == sum_h of mean_h(x); cast per branch
        # inside the reduce so only one short-lived f32 temp exists at a time.
        pooled = jnp.mean(x_refs[0][...].astype(jnp.float32), axis=-1)      # (Bt, C)
        for h in range(1, height):
            pooled = pooled + jnp.mean(x_refs[h][...].astype(jnp.float32), axis=-1)

        w1 = w1_ref[...].astype(jnp.float32)                                # (d, C)
        w2 = w2_ref[...].astype(jnp.float32)                                # (height*C, d)

        if use_mxu:
            # MXU is otherwise idle in this kernel; use it for larger channel counts.
            hidden = jnp.maximum(
                jnp.dot(pooled, w1.T, preferred_element_type=jnp.float32), 0.0)      # (Bt, d)
            logits_all = jnp.dot(hidden, w2.T, preferred_element_type=jnp.float32)   # (Bt, height*C)
            logits = [logits_all[:, h * C:(h + 1) * C] for h in range(height)]
        else:
            # VPU contraction (broadcast-mul + lane reduce) for tiny C / d.
            hidden = jnp.sum(pooled[:, None, :] * w1[None, :, :], axis=-1)            # (Bt, d)
            hidden = jnp.maximum(hidden, 0.0)
            logits = [
                jnp.sum(hidden[:, None, :] * w2[None, h * C:(h + 1) * C, :], axis=-1)
                for h in range(height)
            ]                                                                          # height x (Bt, C)

        # Numerically-stable softmax over the branch axis; exact divide (tiny tensor).
        m = logits[0]
        for l in logits[1:]:
            m = jnp.maximum(m, l)
        exps = [jnp.exp(l - m) for l in logits]
        denom = exps[0]
        for e in exps[1:]:
            denom = denom + e
        scales = [(e / denom).astype(bulk_dtype)[:, :, None] for e in exps]            # (Bt, C, 1)

        # --- weighted sum: re-load each branch tile, bulk work in bulk_dtype.
        out = x_refs[0][...].astype(bulk_dtype) * scales[0]
        for h in range(1, height):
            out = out + x_refs[h][...].astype(bulk_dtype) * scales[h]
        o_ref[...] = out.astype(o_ref.dtype)

    return kernel


# --------------------------- sizing heuristics -------------------------------


def _device_kind():
    try:
        return jax.devices()[0].device_kind.lower()
    except Exception:
        return ""


def _num_tensorcores():
    """TensorCores per chip: 2 on v7x, 1 on v5e/v6e (and earlier)."""
    try:
        info = pltpu.get_tpu_info()
        for attr in ("num_cores", "tensorcore_count", "num_tensorcores", "cores_per_chip"):
            n = getattr(info, attr, None)
            if isinstance(n, int) and n > 0:
                return n
    except Exception:
        pass
    kind = _device_kind()
    return 2 if ("v7" in kind or "7x" in kind) else 1


def _has_bf16_valu():
    """bf16 VALU path exists on v6e/v7x; not on v5e and earlier."""
    kind = _device_kind()
    if not kind:
        return True
    return not any(t in kind for t in ("v2", "v3", "v4", "v5"))


def _vmem_limit_bytes():
    """Generation-aware scoped-VMEM limit: half of physical, capped at 64 MiB."""
    try:
        cap = int(pltpu.get_tpu_info().vmem_capacity_bytes)
    except Exception:
        cap = 64 * 1024 * 1024  # conservative fallback (works on v5e/v6e/v7x)
    return int(min(cap // 2, 64 * 1024 * 1024))


def _pick_batch_tile(B, per_elem_bytes, budget_bytes, num_cores):
    """Batch elements per grid step, sized from the VMEM budget.

    Only split the grid for megacore when the chip actually has 2 TensorCores,
    and round the step count up to a multiple of the core count so both cores
    get equal work.  Ragged last blocks are allowed (grid = cdiv(B, bt)).
    """
    bt = max(1, int(budget_bytes // max(per_elem_bytes, 1)))
    bt = min(bt, B)
    if num_cores >= 2 and B >= num_cores:
        steps = max(pl.cdiv(B, bt), num_cores)
        steps = ((steps + num_cores - 1) // num_cores) * num_cores
        bt = pl.cdiv(B, steps)
    return bt


# ------------------------------- wrapper -------------------------------------


def sk_fusion(in_feats, w1, w2):
    """in_feats: list of `height` arrays (B, C, H, W); w1: (d, C); w2: (height*C, d)."""
    height = len(in_feats)
    B, C, H, W = in_feats[0].shape
    HW = H * W
    d = w1.shape[0]

    # Free view: collapse trailing spatial dims only -- no stack/concat copy.
    branches = [f.reshape(B, C, HW) for f in in_feats]
    in_dtype = branches[0].dtype
    in_itemsize = jnp.dtype(in_dtype).itemsize

    # Bulk elementwise work stays in the input dtype only where bf16 VALUs exist.
    if in_dtype == jnp.bfloat16 and _has_bf16_valu():
        bulk_dtype = jnp.bfloat16
    else:
        bulk_dtype = jnp.float32
    bulk_itemsize = jnp.dtype(bulk_dtype).itemsize

    use_mxu = C >= 128 or (height * C) >= 256

    # VMEM accounting per batch element:
    #   double-buffered DMA tiles (height inputs + 1 output, input dtype)
    #   + one short-lived f32 branch temp (pooling cast)
    #   + the out accumulator in the bulk compute dtype.
    per_elem = ((height + 1) * C * HW * in_itemsize * 2
                + C * HW * 4
                + C * HW * bulk_itemsize)

    vmem_limit = _vmem_limit_bytes()
    budget = int(vmem_limit * 0.8)          # ~20% headroom under vmem_limit_bytes
    num_cores = _num_tensorcores()
    bt = _pick_batch_tile(B, per_elem, budget, num_cores)
    grid = (pl.cdiv(B, bt),)

    kernel = _make_skfusion_kernel(height, bulk_dtype, use_mxu)

    in_specs = [
        pl.BlockSpec((d, C), lambda b: (0, 0)),                # w1 (full, tiny)
        pl.BlockSpec((height * C, d), lambda b: (0, 0)),       # w2 (full, tiny)
    ] + [
        pl.BlockSpec((bt, C, HW), lambda b: (b, 0, 0))         # one spec per branch
        for _ in range(height)
    ]

    out = pl.pallas_call(
        kernel,
        out_shape=jax.ShapeDtypeStruct((B, C, HW), in_dtype),
        grid_spec=pltpu.PrefetchScalarGridSpec(
            num_scalar_prefetch=0,
            grid=grid,
            in_specs=in_specs,
            out_specs=pl.BlockSpec((bt, C, HW), lambda b: (b, 0, 0)),
        ),
        compiler_params=pltpu.CompilerParams(
            dimension_semantics=("parallel",),
            vmem_limit_bytes=vmem_limit,
        ),
    )(w1, w2, *branches)

    return out.reshape(B, C, H, W)


# ------------------------------ reference ------------------------------------


def sk_fusion_ref(in_feats, w1, w2):
    """Plain-JAX reference matching the PyTorch forward."""
    B, C, H, W = in_feats[0].shape
    x = jnp.stack(in_feats, axis=1)                # (B, height, C, H, W)
    feats_sum = jnp.sum(x, axis=1)                 # (B, C, H, W)
    pooled = jnp.mean(feats_sum, axis=(2, 3))      # (B, C)
    hidden = jnp.maximum(pooled @ w1.T, 0.0)       # (B, d)
    logits = hidden @ w2.T                         # (B, height*C)
    attn = jax.nn.softmax(logits.reshape(B, len(in_feats), C), axis=1)
    return jnp.sum(x * attn[:, :, :, None, None], axis=1)


if __name__ == "__main__":
    # SKFusion(dim=8, height=2, reduction=8) -> d = max(8/8, 4) = 4
    B, C, H, W = 2, 8, 16, 16
    height, reduction = 2, 8
    d = max(C // reduction, 4)

    key = jax.random.PRNGKey(0)
    k1, k2, k3, k4 = jax.random.split(key, 4)
    x0 = jax.random.normal(k1, (B, C, H, W), jnp.float32)
    x1 = jax.random.normal(k2, (B, C, H, W), jnp.float32)
    # deterministic synthetic weights for the two bias-free 1x1 convs
    w1 = 0.2 * jax.random.normal(k3, (d, C), jnp.float32)            # Conv2d(dim, d, 1)
    w2 = 0.2 * jax.random.normal(k4, (C * height, d), jnp.float32)   # Conv2d(d, dim*height, 1)

    out = jax.block_until_ready(sk_fusion([x0, x1], w1, w2))
    ref = sk_fusion_ref([x0, x1], w1, w2)
    assert out.shape == (B, C, H, W)
    assert jnp.allclose(out, ref, atol=1e-4, rtol=1e-4), "mismatch vs reference"
    print("KERNEL_OK")
</pallas_src>

<mosaic_0001>
module attributes {stable_mosaic.version = 11 : i64} {
  func.func @kernel(%arg0: i32, %arg1: memref<4x8xf32, #tpu.memory_space<vmem>>, %arg2: memref<16x4xf32, #tpu.memory_space<vmem>>, %arg3: memref<2x8x256xf32, #tpu.memory_space<vmem>>, %arg4: memref<2x8x256xf32, #tpu.memory_space<vmem>>, %arg5: memref<2x8x256xf32, #tpu.memory_space<vmem>>) attributes {dimension_semantics = [#tpu.dimension_semantics<parallel>], iteration_bounds = array<i64: 1>, scalar_prefetch = 0 : i64, scratch_operands = 0 : i64, tpu.core_type = #tpu.core_type<tc>, window_params = [{pipeline_mode = #tpu.pipeline_mode<synchronous>, transform_indices = @transform_0, window_bounds = array<i64: 4, 8>}, {pipeline_mode = #tpu.pipeline_mode<synchronous>, transform_indices = @transform_1, window_bounds = array<i64: 16, 4>}, {transform_indices = @transform_2, window_bounds = array<i64: 2, 8, 256>}, {transform_indices = @transform_3, window_bounds = array<i64: 2, 8, 256>}, {transform_indices = @transform_4, window_bounds = array<i64: 2, 8, 256>}]} {
    %c0 = arith.constant 0 : index
    %c0_0 = arith.constant 0 : index
    %c0_1 = arith.constant 0 : index
    %0 = vector.load %arg3[%c0, %c0_0, %c0_1] : memref<2x8x256xf32, #tpu.memory_space<vmem>>, vector<2x8x256xf32>
    %cst = arith.constant dense<0.000000e+00> : vector<2x8xf32>
    %1 = vector.multi_reduction <add>, %0, %cst [2] : vector<2x8x256xf32> to vector<2x8xf32>
    %cst_2 = arith.constant 2.560000e+02 : f32
    %2 = vector.broadcast %cst_2 : f32 to vector<2x8xf32>
    %3 = arith.divf %1, %2 : vector<2x8xf32>
    %c0_3 = arith.constant 0 : index
    %c0_4 = arith.constant 0 : index
    %c0_5 = arith.constant 0 : index
    %4 = vector.load %arg4[%c0_3, %c0_4, %c0_5] : memref<2x8x256xf32, #tpu.memory_space<vmem>>, vector<2x8x256xf32>
    %cst_6 = arith.constant dense<0.000000e+00> : vector<2x8xf32>
    %5 = vector.multi_reduction <add>, %4, %cst_6 [2] : vector<2x8x256xf32> to vector<2x8xf32>
    %cst_7 = arith.constant 2.560000e+02 : f32
    %6 = vector.broadcast %cst_7 : f32 to vector<2x8xf32>
    %7 = arith.divf %5, %6 : vector<2x8xf32>
    %8 = arith.addf %3, %7 : vector<2x8xf32>
    %c0_8 = arith.constant 0 : index
    %c0_9 = arith.constant 0 : index
    %9 = vector.load %arg1[%c0_8, %c0_9] : memref<4x8xf32, #tpu.memory_space<vmem>>, vector<4x8xf32>
    %c0_10 = arith.constant 0 : index
    %c0_11 = arith.constant 0 : index
    %10 = vector.load %arg2[%c0_10, %c0_11] : memref<16x4xf32, #tpu.memory_space<vmem>>, vector<16x4xf32>
    %11 = vector.shape_cast %8 : vector<2x8xf32> to vector<2x1x8xf32>
    %12 = vector.shape_cast %9 : vector<4x8xf32> to vector<1x4x8xf32>
    %13 = vector.broadcast %11 : vector<2x1x8xf32> to vector<2x4x8xf32>
    %14 = vector.broadcast %12 : vector<1x4x8xf32> to vector<2x4x8xf32>
    %15 = arith.mulf %13, %14 : vector<2x4x8xf32>
    %cst_12 = arith.constant dense<0.000000e+00> : vector<2x4xf32>
    %16 = vector.multi_reduction <add>, %15, %cst_12 [2] : vector<2x4x8xf32> to vector<2x4xf32>
    %cst_13 = arith.constant 0.000000e+00 : f32
    %17 = vector.broadcast %cst_13 : f32 to vector<2x4xf32>
    %18 = arith.maximumf %16, %17 : vector<2x4xf32>
    %19 = vector.shape_cast %18 : vector<2x4xf32> to vector<2x1x4xf32>
    %20 = vector.extract_strided_slice %10 {offsets = [0, 0], sizes = [8, 4], strides = [1, 1]} : vector<16x4xf32> to vector<8x4xf32>
    %21 = vector.shape_cast %20 : vector<8x4xf32> to vector<1x8x4xf32>
    %22 = vector.broadcast %19 : vector<2x1x4xf32> to vector<2x8x4xf32>
    %23 = vector.broadcast %21 : vector<1x8x4xf32> to vector<2x8x4xf32>
    %24 = arith.mulf %22, %23 : vector<2x8x4xf32>
    %cst_14 = arith.constant dense<0.000000e+00> : vector<2x8xf32>
    %25 = vector.multi_reduction <add>, %24, %cst_14 [2] : vector<2x8x4xf32> to vector<2x8xf32>
    %26 = vector.shape_cast %18 : vector<2x4xf32> to vector<2x1x4xf32>
    %27 = vector.extract_strided_slice %10 {offsets = [8, 0], sizes = [8, 4], strides = [1, 1]} : vector<16x4xf32> to vector<8x4xf32>
    %28 = vector.shape_cast %27 : vector<8x4xf32> to vector<1x8x4xf32>
    %29 = vector.broadcast %26 : vector<2x1x4xf32> to vector<2x8x4xf32>
    %30 = vector.broadcast %28 : vector<1x8x4xf32> to vector<2x8x4xf32>
    %31 = arith.mulf %29, %30 : vector<2x8x4xf32>
    %cst_15 = arith.constant dense<0.000000e+00> : vector<2x8xf32>
    %32 = vector.multi_reduction <add>, %31, %cst_15 [2] : vector<2x8x4xf32> to vector<2x8xf32>
    %33 = arith.maximumf %25, %32 : vector<2x8xf32>
    %34 = arith.subf %25, %33 : vector<2x8xf32>
    %35 = math.exp %34 : vector<2x8xf32>
    %36 = arith.subf %32, %33 : vector<2x8xf32>
    %37 = math.exp %36 : vector<2x8xf32>
    %38 = arith.addf %35, %37 : vector<2x8xf32>
    %39 = arith.divf %35, %38 : vector<2x8xf32>
    %40 = vector.shape_cast %39 : vector<2x8xf32> to vector<2x8x1xf32>
    %41 = arith.divf %37, %38 : vector<2x8xf32>
    %42 = vector.shape_cast %41 : vector<2x8xf32> to vector<2x8x1xf32>
    %c0_16 = arith.constant 0 : index
    %c0_17 = arith.constant 0 : index
    %c0_18 = arith.constant 0 : index
    %43 = vector.load %arg3[%c0_16, %c0_17, %c0_18] : memref<2x8x256xf32, #tpu.memory_space<vmem>>, vector<2x8x256xf32>
    %44 = vector.broadcast %40 : vector<2x8x1xf32> to vector<2x8x256xf32>
    %45 = arith.mulf %43, %44 : vector<2x8x256xf32>
    %c0_19 = arith.constant 0 : index
    %c0_20 = arith.constant 0 : index
    %c0_21 = arith.constant 0 : index
    %46 = vector.load %arg4[%c0_19, %c0_20, %c0_21] : memref<2x8x256xf32, #tpu.memory_space<vmem>>, vector<2x8x256xf32>
    %47 = vector.broadcast %42 : vector<2x8x1xf32> to vector<2x8x256xf32>
    %48 = arith.mulf %46, %47 : vector<2x8x256xf32>
    %49 = arith.addf %45, %48 : vector<2x8x256xf32>
    %c0_22 = arith.constant 0 : index
    %c0_23 = arith.constant 0 : index
    %c0_24 = arith.constant 0 : index
    %50 = vector.load %arg5[%c0_22, %c0_23, %c0_24] : memref<2x8x256xf32, #tpu.memory_space<vmem>>, vector<2x8x256xf32>
    tpu.vector_store %arg5[%c0_22, %c0_23, %c0_24], %49 {strides = array<i32>} : memref<2x8x256xf32, #tpu.memory_space<vmem>>, vector<2x8x256xf32>,
    return
  }
  func.func @transform_0(%arg0: i32) -> (i32, i32) {
    %c0_i32 = arith.constant 0 : i32
    %c0_i32_0 = arith.constant 0 : i32
    %c0_i32_1 = arith.constant 0 : i32
    return %c0_i32, %c0_i32_0 : i32, i32
  }
  func.func @transform_1(%arg0: i32) -> (i32, i32) {
    %c0_i32 = arith.constant 0 : i32
    %c0_i32_0 = arith.constant 0 : i32
    %c0_i32_1 = arith.constant 0 : i32
    return %c0_i32, %c0_i32_0 : i32, i32
  }
  func.func @transform_2(%arg0: i32) -> (i32, i32, i32) {
    %c0_i32 = arith.constant 0 : i32
    %c0_i32_0 = arith.constant 0 : i32
    %c0_i32_1 = arith.constant 0 : i32
    return %arg0, %c0_i32, %c0_i32_0 : i32, i32, i32
  }
  func.func @transform_3(%arg0: i32) -> (i32, i32, i32) {
    %c0_i32 = arith.constant 0 : i32
    %c0_i32_0 = arith.constant 0 : i32
    %c0_i32_1 = arith.constant 0 : i32
    return %arg0, %c0_i32, %c0_i32_0 : i32, i32, i32
  }
  func.func @transform_4(%arg0: i32) -> (i32, i32, i32) {
    %c0_i32 = arith.constant 0 : i32
    %c0_i32_0 = arith.constant 0 : i32
    %c0_i32_1 = arith.constant 0 : i32
    return %arg0, %c0_i32, %c0_i32_0 : i32, i32, i32
  }
}

</mosaic_0001>

<llo_original>
// kernel: tpu_custom_call.1
$region0: #{tpu_custom_call.1}
  #allocation0 [shape = 'u32[]', space=smem, size = 0x4, offset = 0x4, fixed_abs, tag = 'smem constant byte address 0x4 - core index']
  #allocation1 [shape = 'u32[144,128]{1,0:T(1,128)}', space=vmem, size = 0x12000, scoped, tag = 'internal scratch']
  %s0 = inlined_call_operand.vmem [shape: f32[4,8], index: 0, kind: input, shape index: {}]
  %s1 = inlined_call_operand.vmem [shape: f32[16,4], index: 1, kind: input, shape index: {}]
  %s2 = inlined_call_operand.hbm [shape: f32[2,8,256], index: 2, kind: input, shape index: {}]
  %s3 = inlined_call_operand.hbm [shape: f32[2,8,256], index: 3, kind: input, shape index: {}]
  %s4 = inlined_call_operand.hbm [shape: f32[2,8,256], index: 4, kind: output, shape index: {}]
  %s5 = sld [smem:[#allocation0]]
  $region34: #{tpu_custom_call.1} parent=0
    _
  %s7 = ssub.s32 1, %s5
  %s8 = scalar_select 0, %s7, %s5
  $region1: #{tpu_custom_call.1} parent=0
    #allocation2 [shape = 'u8[16384]{0}', space=vmem, size = 0x4000, scoped, tag = 'input window, operand 2, single buffered']
    #allocation3 [shape = 's32[1]{0}', space=sflag, size = 0x4, scoped, tag = 'scoped memory for tpu_custom_call.1']
    #allocation4 [shape = 's32[1]{0}', space=sflag, size = 0x4, scoped, tag = 'scoped memory for tpu_custom_call.1']
    #allocation5 [shape = 'u8[16384]{0}', space=vmem, size = 0x4000, scoped, tag = 'input window, operand 3, single buffered']
    #allocation6 [shape = 's32[1]{0}', space=sflag, size = 0x4, scoped, tag = 'scoped memory for tpu_custom_call.1']
    #allocation7 [shape = 'u8[16384]{0}', space=vmem, size = 0x4000, scoped, tag = 'output window, operand 0, single buffered']
    %9 = vsyncpa [#allocation3], 0
    %10 = vsyncpa [#allocation6], 0
    %11 = vsyncpa [#allocation4], 0
    // Predicated region
    $region2: #{tpu_custom_call.1} parent=1 // pred_check
      _
    $region3: #{tpu_custom_call.1} parent=1 // pred_check_branch
      %13 = sbr.rel (0) target = $region5
    $region4: #{tpu_custom_call.1} parent=1 // pred_region
      _
    $region5: #{tpu_custom_call.1} parent=1 // pred_fallthru
      _
    // Predicated region
    $region6: #{tpu_custom_call.1} parent=1 // pred_check
      _
    $region7: #{tpu_custom_call.1} parent=1 // pred_check_branch
      %15 = sbr.rel (0) target = $region9
    $region8: #{tpu_custom_call.1} parent=1 // pred_region
      _
    $region9: #{tpu_custom_call.1} parent=1 // pred_fallthru
      _
    // Predicated region
    $region10: #{tpu_custom_call.1} parent=1 // pred_check
      _
    $region11: #{tpu_custom_call.1} parent=1 // pred_check_branch
      %17 = sbr.rel (0) target = $region13
    $region12: #{tpu_custom_call.1} parent=1 // pred_region
      %s19 = ssub.s32 512, 512
      %20 = vsyncadd [#allocation3], %s19
      %s21 = sshll.u32 [#allocation2], 4
      %s22 = int_to_ptr.vmem [resolvable:$true] %s21
      %27 = dma.hbm_to_vmem [thread:$0]  %s2, 512, %s22, [#allocation3], 256, 256, 16
    $region13: #{tpu_custom_call.1} parent=1 // pred_fallthru
      _
    // Predicated region
    $region14: #{tpu_custom_call.1} parent=1 // pred_check
      _
    $region15: #{tpu_custom_call.1} parent=1 // pred_check_branch
      %29 = sbr.rel (0) target = $region17
    $region16: #{tpu_custom_call.1} parent=1 // pred_region
      %s31 = ssub.s32 512, 512
      %32 = vsyncadd [#allocation6], %s31
      %s33 = sshll.u32 [#allocation5], 4
      %s34 = int_to_ptr.vmem [resolvable:$true] %s33
      %39 = dma.hbm_to_vmem [thread:$0]  %s3, 512, %s34, [#allocation6], 256, 256, 16
    $region17: #{tpu_custom_call.1} parent=1 // pred_fallthru
      _
    // Predicated region
    $region18: #{tpu_custom_call.1} parent=1 // pred_check
      _
    $region19: #{tpu_custom_call.1} parent=1 // pred_check_branch
      %41 = sbr.rel (0) target = $region21
    $region20: #{tpu_custom_call.1} parent=1 // pred_region
      %42 = dma.done [#allocation3], 512
    $region21: #{tpu_custom_call.1} parent=1 // pred_fallthru
      _
    // Predicated region
    $region22: #{tpu_custom_call.1} parent=1 // pred_check
      _
    $region23: #{tpu_custom_call.1} parent=1 // pred_check_branch
      %44 = sbr.rel (0) target = $region25
    $region24: #{tpu_custom_call.1} parent=1 // pred_region
      %45 = dma.done [#allocation6], 512
    $region25: #{tpu_custom_call.1} parent=1 // pred_fallthru
      _
    %v46 = vld [vmem:[#allocation2] sm:$0xff]
    %v47 = vld [vmem:[#allocation2 + $0x8] sm:$0xff]
    %v48 = vld [vmem:[#allocation2 + $0x10] sm:$0xff]
    %v49 = vld [vmem:[#allocation2 + $0x18] sm:$0xff]
    %v50 = vadd.f32 %v46, %v47
    %51 = vadd.xlane.f32.xlu0 %v50
    %v52 = vpop.xlane.xlu0 %51
    %v53 = vadd.f32 %v48, %v49
    %54 = vadd.xlane.f32.xlu0 %v53
    %v55 = vpop.xlane.xlu0 %54
    %v56 = vrcp.pop 256.0
    %v57 = vmul.f32 %v52, %v56
    %v58 = vmul.f32 %v55, %v56
    %v59 = vld [vmem:[#allocation5] sm:$0xff]
    %v60 = vld [vmem:[#allocation5 + $0x8] sm:$0xff]
    %v61 = vld [vmem:[#allocation5 + $0x10] sm:$0xff]
    %v62 = vld [vmem:[#allocation5 + $0x18] sm:$0xff]
    %v63 = vadd.f32 %v59, %v60
    %64 = vadd.xlane.f32.xlu0 %v63
    %v65 = vpop.xlane.xlu0 %64
    %v66 = vadd.f32 %v61, %v62
    %67 = vadd.xlane.f32.xlu0 %v66
    %v68 = vpop.xlane.xlu0 %67
    %v69 = vmul.f32 %v65, %v56
    %v70 = vmul.f32 %v68, %v56
    %v71 = vadd.f32 %v57, %v69
    %v72 = vadd.f32 %v58, %v70
    %v73 = vld [vmem:[%s0] sm:$0xf]
    %v74 = vld [vmem:[%s1] sm:$0xff]
    %v75 = vld [vmem:[%s1 + $0x8] sm:$0xff]
    %v77 = vlaneseq
    %v78 = vshrl.u32 %v77, 7
    %v79 = vsub.s32 0, %v78
    %v80 = vrot.slane %v73, %v79
    %82 = vbcast.lane.b32.xlu0 %v80, 256
    %v83 = vpop.permute.xlu0 %82
    %v84 = vlaneseq
    %v85 = vshrl.u32 %v84, 7
    %v86 = vsub.s32 1, %v85
    %v87 = vrot.slane %v73, %v86
    %89 = vbcast.lane.b32.xlu0 %v87, 256
    %v90 = vpop.permute.xlu0 %89
    %v91 = vlaneseq
    %v92 = vshrl.u32 %v91, 7
    %v93 = vsub.s32 2, %v92
    %v94 = vrot.slane %v73, %v93
    %96 = vbcast.lane.b32.xlu0 %v94, 256
    %v97 = vpop.permute.xlu0 %96
    %v98 = vlaneseq
    %v99 = vshrl.u32 %v98, 7
    %v100 = vsub.s32 3, %v99
    %v101 = vrot.slane %v73, %v100
    %103 = vbcast.lane.b32.xlu0 %v101, 256
    %v104 = vpop.permute.xlu0 %103
    %v109 = vmul.f32 %v71, %v83
    %v110 = vmul.f32 %v71, %v90
    %v111 = vmul.f32 %v71, %v97
    %v112 = vmul.f32 %v71, %v104
    %v113 = vmul.f32 %v72, %v83
    %v114 = vmul.f32 %v72, %v90
    %v115 = vmul.f32 %v72, %v97
    %v116 = vmul.f32 %v72, %v104
    %125 = vset.pattern.permute.xlu0 0
    %126 = vperm.xlu0 %125, %v109
    %v127 = vpop.permute.xlu0 %126
    %128 = vset.pattern.permute.xlu0 0
    %129 = vperm.xlu0 %128, %v110
    %v130 = vpop.permute.xlu0 %129
    %131 = vset.pattern.permute.xlu0 0
    %132 = vperm.xlu0 %131, %v111
    %v133 = vpop.permute.xlu0 %132
    %134 = vset.pattern.permute.xlu0 0
    %135 = vperm.xlu0 %134, %v112
    %v136 = vpop.permute.xlu0 %135
    %137 = vset.pattern.permute.xlu0 0
    %138 = vperm.xlu0 %137, %v113
    %v139 = vpop.permute.xlu0 %138
    %140 = vset.pattern.permute.xlu0 0
    %141 = vperm.xlu0 %140, %v114
    %v142 = vpop.permute.xlu0 %141
    %143 = vset.pattern.permute.xlu0 0
    %144 = vperm.xlu0 %143, %v115
    %v145 = vpop.permute.xlu0 %144
    %146 = vset.pattern.permute.xlu0 0
    %147 = vperm.xlu0 %146, %v116
    %v148 = vpop.permute.xlu0 %147
    %v149 = vlaneseq
    %v150 = vand.u32 %v149, 127
    %v151 = vlaneseq
    %v152 = vshrl.u32 %v151, 7
    %v153 = vsub.s32 %v150, %v152
    %v154 = vrot.slane %v127, %v153
    %v155 = vlaneseq
    %v156 = vshrl.u32 %v155, 7
    %v157 = vsub.s32 %v150, %v156
    %v158 = vrot.slane %v130, %v157
    %v159 = vlaneseq
    %v160 = vshrl.u32 %v159, 7
    %v161 = vsub.s32 %v150, %v160
    %v162 = vrot.slane %v133, %v161
    %v163 = vlaneseq
    %v164 = vshrl.u32 %v163, 7
    %v165 = vsub.s32 %v150, %v164
    %v166 = vrot.slane %v136, %v165
    %v167 = vlaneseq
    %v168 = vshrl.u32 %v167, 7
    %v169 = vsub.s32 %v150, %v168
    %v170 = vrot.slane %v139, %v169
    %v171 = vlaneseq
    %v172 = vshrl.u32 %v171, 7
    %v173 = vsub.s32 %v150, %v172
    %v174 = vrot.slane %v142, %v173
    %v175 = vlaneseq
    %v176 = vshrl.u32 %v175, 7
    %v177 = vsub.s32 %v150, %v176
    %v178 = vrot.slane %v145, %v177
    %v179 = vlaneseq
    %v180 = vshrl.u32 %v179, 7
    %v181 = vsub.s32 %v150, %v180
    %v182 = vrot.slane %v148, %v181
    %vm183 = vcmask 1041409
    %v184 = vsel %vm183, %v158, %v154
    %vm185 = vcmask 1042434
    %v186 = vsel %vm185, %v162, %v184
    %vm187 = vcmask 1043459
    %v188 = vsel %vm187, %v166, %v186
    %v189 = vsel %vm183, %v174, %v170
    %v190 = vsel %vm185, %v178, %v189
    %v191 = vsel %vm187, %v182, %v190
    %vm194 = vcmask 60416
    %v195 = vsel %vm194, %v188, 0.0
    %196 = vadd.xlane.f32.xlu0 %v195
    %v197 = vpop.xlane.xlu0 %196
    %v198 = vsel %vm194, %v191, 0.0
    %199 = vadd.xlane.f32.xlu0 %v198
    %v200 = vpop.xlane.xlu0 %199
    %v201 = vmax.f32 %v197, 0.0
    %v202 = vmax.f32 %v200, 0.0
    %v204 = vlaneseq
    %v205 = vshrl.u32 %v204, 7
    %v206 = vsub.s32 0, %v205
    %v207 = vrot.slane %v74, %v206
    %209 = vbcast.lane.b32.xlu0 %v207, 256
    %v210 = vpop.permute.xlu0 %209
    %v211 = vlaneseq
    %v212 = vshrl.u32 %v211, 7
    %v213 = vsub.s32 1, %v212
    %v214 = vrot.slane %v74, %v213
    %216 = vbcast.lane.b32.xlu0 %v214, 256
    %v217 = vpop.permute.xlu0 %216
    %v218 = vlaneseq
    %v219 = vshrl.u32 %v218, 7
    %v220 = vsub.s32 2, %v219
    %v221 = vrot.slane %v74, %v220
    %223 = vbcast.lane.b32.xlu0 %v221, 256
    %v224 = vpop.permute.xlu0 %223
    %v225 = vlaneseq
    %v226 = vshrl.u32 %v225, 7
    %v227 = vsub.s32 3, %v226
    %v228 = vrot.slane %v74, %v227
    %230 = vbcast.lane.b32.xlu0 %v228, 256
    %v231 = vpop.permute.xlu0 %230
    %v232 = vlaneseq
    %v233 = vshrl.u32 %v232, 7
    %v234 = vsub.s32 4, %v233
    %v235 = vrot.slane %v74, %v234
    %237 = vbcast.lane.b32.xlu0 %v235, 256
    %v238 = vpop.permute.xlu0 %237
    %v239 = vlaneseq
    %v240 = vshrl.u32 %v239, 7
    %v241 = vsub.s32 5, %v240
    %v242 = vrot.slane %v74, %v241
    %244 = vbcast.lane.b32.xlu0 %v242, 256
    %v245 = vpop.permute.xlu0 %244
    %v246 = vlaneseq
    %v247 = vshrl.u32 %v246, 7
    %v248 = vsub.s32 6, %v247
    %v249 = vrot.slane %v74, %v248
    %251 = vbcast.lane.b32.xlu0 %v249, 256
    %v252 = vpop.permute.xlu0 %251
    %v253 = vlaneseq
    %v254 = vshrl.u32 %v253, 7
    %v255 = vsub.s32 7, %v254
    %v256 = vrot.slane %v74, %v255
    %258 = vbcast.lane.b32.xlu0 %v256, 256
    %v259 = vpop.permute.xlu0 %258
    %v268 = vmul.f32 %v201, %v210
    %v269 = vmul.f32 %v201, %v217
    %v270 = vmul.f32 %v201, %v224
    %v271 = vmul.f32 %v201, %v231
    %v272 = vmul.f32 %v201, %v238
    %v273 = vmul.f32 %v201, %v245
    %v274 = vmul.f32 %v201, %v252
    %v275 = vmul.f32 %v201, %v259
    %v276 = vmul.f32 %v202, %v210
    %v277 = vmul.f32 %v202, %v217
    %v278 = vmul.f32 %v202, %v224
    %v279 = vmul.f32 %v202, %v231
    %v280 = vmul.f32 %v202, %v238
    %v281 = vmul.f32 %v202, %v245
    %v282 = vmul.f32 %v202, %v252
    %v283 = vmul.f32 %v202, %v259
    %300 = vset.pattern.permute.xlu0 0
    %301 = vperm.xlu0 %300, %v268
    %v302 = vpop.permute.xlu0 %301
    %303 = vset.pattern.permute.xlu0 0
    %304 = vperm.xlu0 %303, %v269
    %v305 = vpop.permute.xlu0 %304
    %306 = vset.pattern.permute.xlu0 0
    %307 = vperm.xlu0 %306, %v270
    %v308 = vpop.permute.xlu0 %307
    %309 = vset.pattern.permute.xlu0 0
    %310 = vperm.xlu0 %309, %v271
    %v311 = vpop.permute.xlu0 %310
    %312 = vset.pattern.permute.xlu0 0
    %313 = vperm.xlu0 %312, %v272
    %v314 = vpop.permute.xlu0 %313
    %315 = vset.pattern.permute.xlu0 0
    %316 = vperm.xlu0 %315, %v273
    %v317 = vpop.permute.xlu0 %316
    %318 = vset.pattern.permute.xlu0 0
    %319 = vperm.xlu0 %318, %v274
    %v320 = vpop.permute.xlu0 %319
    %321 = vset.pattern.permute.xlu0 0
    %322 = vperm.xlu0 %321, %v275
    %v323 = vpop.permute.xlu0 %322
    %324 = vset.pattern.permute.xlu0 0
    %325 = vperm.xlu0 %324, %v276
    %v326 = vpop.permute.xlu0 %325
    %327 = vset.pattern.permute.xlu0 0
    %328 = vperm.xlu0 %327, %v277
    %v329 = vpop.permute.xlu0 %328
    %330 = vset.pattern.permute.xlu0 0
    %331 = vperm.xlu0 %330, %v278
    %v332 = vpop.permute.xlu0 %331
    %333 = vset.pattern.permute.xlu0 0
    %334 = vperm.xlu0 %333, %v279
    %v335 = vpop.permute.xlu0 %334
    %336 = vset.pattern.permute.xlu0 0
    %337 = vperm.xlu0 %336, %v280
    %v338 = vpop.permute.xlu0 %337
    %339 = vset.pattern.permute.xlu0 0
    %340 = vperm.xlu0 %339, %v281
    %v341 = vpop.permute.xlu0 %340
    %342 = vset.pattern.permute.xlu0 0
    %343 = vperm.xlu0 %342, %v282
    %v344 = vpop.permute.xlu0 %343
    %345 = vset.pattern.permute.xlu0 0
    %346 = vperm.xlu0 %345, %v283
    %v347 = vpop.permute.xlu0 %346
    %v348 = vlaneseq
    %v349 = vshrl.u32 %v348, 7
    %v350 = vsub.s32 %v150, %v349
    %v351 = vrot.slane %v302, %v350
    %v352 = vlaneseq
    %v353 = vshrl.u32 %v352, 7
    %v354 = vsub.s32 %v150, %v353
    %v355 = vrot.slane %v305, %v354
    %v356 = vlaneseq
    %v357 = vshrl.u32 %v356, 7
    %v358 = vsub.s32 %v150, %v357
    %v359 = vrot.slane %v308, %v358
    %v360 = vlaneseq
    %v361 = vshrl.u32 %v360, 7
    %v362 = vsub.s32 %v150, %v361
    %v363 = vrot.slane %v311, %v362
    %v364 = vlaneseq
    %v365 = vshrl.u32 %v364, 7
    %v366 = vsub.s32 %v150, %v365
    %v367 = vrot.slane %v314, %v366
    %v368 = vlaneseq
    %v369 = vshrl.u32 %v368, 7
    %v370 = vsub.s32 %v150, %v369
    %v371 = vrot.slane %v317, %v370
    %v372 = vlaneseq
    %v373 = vshrl.u32 %v372, 7
    %v374 = vsub.s32 %v150, %v373
    %v375 = vrot.slane %v320, %v374
    %v376 = vlaneseq
    %v377 = vshrl.u32 %v376, 7
    %v378 = vsub.s32 %v150, %v377
    %v379 = vrot.slane %v323, %v378
    %v380 = vlaneseq
    %v381 = vshrl.u32 %v380, 7
    %v382 = vsub.s32 %v150, %v381
    %v383 = vrot.slane %v326, %v382
    %v384 = vlaneseq
    %v385 = vshrl.u32 %v384, 7
    %v386 = vsub.s32 %v150, %v385
    %v387 = vrot.slane %v329, %v386
    %v388 = vlaneseq
    %v389 = vshrl.u32 %v388, 7
    %v390 = vsub.s32 %v150, %v389
    %v391 = vrot.slane %v332, %v390
    %v392 = vlaneseq
    %v393 = vshrl.u32 %v392, 7
    %v394 = vsub.s32 %v150, %v393
    %v395 = vrot.slane %v335, %v394
    %v396 = vlaneseq
    %v397 = vshrl.u32 %v396, 7
    %v398 = vsub.s32 %v150, %v397
    %v399 = vrot.slane %v338, %v398
    %v400 = vlaneseq
    %v401 = vshrl.u32 %v400, 7
    %v402 = vsub.s32 %v150, %v401
    %v403 = vrot.slane %v341, %v402
    %v404 = vlaneseq
    %v405 = vshrl.u32 %v404, 7
    %v406 = vsub.s32 %v150, %v405
    %v407 = vrot.slane %v344, %v406
    %v408 = vlaneseq
    %v409 = vshrl.u32 %v408, 7
    %v410 = vsub.s32 %v150, %v409
    %v411 = vrot.slane %v347, %v410
    %v412 = vsel %vm183, %v355, %v351
    %v413 = vsel %vm185, %v359, %v412
    %v414 = vsel %vm187, %v363, %v413
    %vm415 = vcmask 1044484
    %v416 = vsel %vm415, %v367, %v414
    %vm417 = vcmask 1045509
    %v418 = vsel %vm417, %v371, %v416
    %vm419 = vcmask 1046534
    %v420 = vsel %vm419, %v375, %v418
    %vm421 = vcmask 1047559
    %v422 = vsel %vm421, %v379, %v420
    %v423 = vsel %vm183, %v387, %v383
    %v424 = vsel %vm185, %v391, %v423
    %v425 = vsel %vm187, %v395, %v424
    %v426 = vsel %vm415, %v399, %v425
    %v427 = vsel %vm417, %v403, %v426
    %v428 = vsel %vm419, %v407, %v427
    %v429 = vsel %vm421, %v411, %v428
    %vm432 = vcmask 31744
    %v433 = vsel %vm432, %v422, 0.0
    %434 = vadd.xlane.f32.xlu0 %v433
    %v435 = vpop.xlane.xlu0 %434
    %v436 = vsel %vm432, %v429, 0.0
    %437 = vadd.xlane.f32.xlu0 %v436
    %v438 = vpop.xlane.xlu0 %437
    %v440 = vlaneseq
    %v441 = vshrl.u32 %v440, 7
    %v442 = vsub.s32 0, %v441
    %v443 = vrot.slane %v75, %v442
    %445 = vbcast.lane.b32.xlu0 %v443, 256
    %v446 = vpop.permute.xlu0 %445
    %v447 = vlaneseq
    %v448 = vshrl.u32 %v447, 7
    %v449 = vsub.s32 1, %v448
    %v450 = vrot.slane %v75, %v449
    %452 = vbcast.lane.b32.xlu0 %v450, 256
    %v453 = vpop.permute.xlu0 %452
    %v454 = vlaneseq
    %v455 = vshrl.u32 %v454, 7
    %v456 = vsub.s32 2, %v455
    %v457 = vrot.slane %v75, %v456
    %459 = vbcast.lane.b32.xlu0 %v457, 256
    %v460 = vpop.permute.xlu0 %459
    %v461 = vlaneseq
    %v462 = vshrl.u32 %v461, 7
    %v463 = vsub.s32 3, %v462
    %v464 = vrot.slane %v75, %v463
    %466 = vbcast.lane.b32.xlu0 %v464, 256
    %v467 = vpop.permute.xlu0 %466
    %v468 = vlaneseq
    %v469 = vshrl.u32 %v468, 7
    %v470 = vsub.s32 4, %v469
    %v471 = vrot.slane %v75, %v470
    %473 = vbcast.lane.b32.xlu0 %v471, 256
    %v474 = vpop.permute.xlu0 %473
    %v475 = vlaneseq
    %v476 = vshrl.u32 %v475, 7
    %v477 = vsub.s32 5, %v476
    %v478 = vrot.slane %v75, %v477
    %480 = vbcast.lane.b32.xlu0 %v478, 256
    %v481 = vpop.permute.xlu0 %480
    %v482 = vlaneseq
    %v483 = vshrl.u32 %v482, 7
    %v484 = vsub.s32 6, %v483
    %v485 = vrot.slane %v75, %v484
    %487 = vbcast.lane.b32.xlu0 %v485, 256
    %v488 = vpop.permute.xlu0 %487
    %v489 = vlaneseq
    %v490 = vshrl.u32 %v489, 7
    %v491 = vsub.s32 7, %v490
    %v492 = vrot.slane %v75, %v491
    %494 = vbcast.lane.b32.xlu0 %v492, 256
    %v495 = vpop.permute.xlu0 %494
    %v504 = vmul.f32 %v201, %v446
    %v505 = vmul.f32 %v201, %v453
    %v506 = vmul.f32 %v201, %v460
    %v507 = vmul.f32 %v201, %v467
    %v508 = vmul.f32 %v201, %v474
    %v509 = vmul.f32 %v201, %v481
    %v510 = vmul.f32 %v201, %v488
    %v511 = vmul.f32 %v201, %v495
    %v512 = vmul.f32 %v202, %v446
    %v513 = vmul.f32 %v202, %v453
    %v514 = vmul.f32 %v202, %v460
    %v515 = vmul.f32 %v202, %v467
    %v516 = vmul.f32 %v202, %v474
    %v517 = vmul.f32 %v202, %v481
    %v518 = vmul.f32 %v202, %v488
    %v519 = vmul.f32 %v202, %v495
    %536 = vset.pattern.permute.xlu0 0
    %537 = vperm.xlu0 %536, %v504
    %v538 = vpop.permute.xlu0 %537
    %539 = vset.pattern.permute.xlu0 0
    %540 = vperm.xlu0 %539, %v505
    %v541 = vpop.permute.xlu0 %540
    %542 = vset.pattern.permute.xlu0 0
    %543 = vperm.xlu0 %542, %v506
    %v544 = vpop.permute.xlu0 %543
    %545 = vset.pattern.permute.xlu0 0
    %546 = vperm.xlu0 %545, %v507
    %v547 = vpop.permute.xlu0 %546
    %548 = vset.pattern.permute.xlu0 0
    %549 = vperm.xlu0 %548, %v508
    %v550 = vpop.permute.xlu0 %549
    %551 = vset.pattern.permute.xlu0 0
    %552 = vperm.xlu0 %551, %v509
    %v553 = vpop.permute.xlu0 %552
    %554 = vset.pattern.permute.xlu0 0
    %555 = vperm.xlu0 %554, %v510
    %v556 = vpop.permute.xlu0 %555
    %557 = vset.pattern.permute.xlu0 0
    %558 = vperm.xlu0 %557, %v511
    %v559 = vpop.permute.xlu0 %558
    %560 = vset.pattern.permute.xlu0 0
    %561 = vperm.xlu0 %560, %v512
    %v562 = vpop.permute.xlu0 %561
    %563 = vset.pattern.permute.xlu0 0
    %564 = vperm.xlu0 %563, %v513
    %v565 = vpop.permute.xlu0 %564
    %566 = vset.pattern.permute.xlu0 0
    %567 = vperm.xlu0 %566, %v514
    %v568 = vpop.permute.xlu0 %567
    %569 = vset.pattern.permute.xlu0 0
    %570 = vperm.xlu0 %569, %v515
    %v571 = vpop.permute.xlu0 %570
    %572 = vset.pattern.permute.xlu0 0
    %573 = vperm.xlu0 %572, %v516
    %v574 = vpop.permute.xlu0 %573
    %575 = vset.pattern.permute.xlu0 0
    %576 = vperm.xlu0 %575, %v517
    %v577 = vpop.permute.xlu0 %576
    %578 = vset.pattern.permute.xlu0 0
    %579 = vperm.xlu0 %578, %v518
    %v580 = vpop.permute.xlu0 %579
    %581 = vset.pattern.permute.xlu0 0
    %582 = vperm.xlu0 %581, %v519
    %v583 = vpop.permute.xlu0 %582
    %v584 = vlaneseq
    %v585 = vshrl.u32 %v584, 7
    %v586 = vsub.s32 %v150, %v585
    %v587 = vrot.slane %v538, %v586
    %v588 = vlaneseq
    %v589 = vshrl.u32 %v588, 7
    %v590 = vsub.s32 %v150, %v589
    %v591 = vrot.slane %v541, %v590
    %v592 = vlaneseq
    %v593 = vshrl.u32 %v592, 7
    %v594 = vsub.s32 %v150, %v593
    %v595 = vrot.slane %v544, %v594
    %v596 = vlaneseq
    %v597 = vshrl.u32 %v596, 7
    %v598 = vsub.s32 %v150, %v597
    %v599 = vrot.slane %v547, %v598
    %v600 = vlaneseq
    %v601 = vshrl.u32 %v600, 7
    %v602 = vsub.s32 %v150, %v601
    %v603 = vrot.slane %v550, %v602
    %v604 = vlaneseq
    %v605 = vshrl.u32 %v604, 7
    %v606 = vsub.s32 %v150, %v605
    %v607 = vrot.slane %v553, %v606
    %v608 = vlaneseq
    %v609 = vshrl.u32 %v608, 7
    %v610 = vsub.s32 %v150, %v609
    %v611 = vrot.slane %v556, %v610
    %v612 = vlaneseq
    %v613 = vshrl.u32 %v612, 7
    %v614 = vsub.s32 %v150, %v613
    %v615 = vrot.slane %v559, %v614
    %v616 = vlaneseq
    %v617 = vshrl.u32 %v616, 7
    %v618 = vsub.s32 %v150, %v617
    %v619 = vrot.slane %v562, %v618
    %v620 = vlaneseq
    %v621 = vshrl.u32 %v620, 7
    %v622 = vsub.s32 %v150, %v621
    %v623 = vrot.slane %v565, %v622
    %v624 = vlaneseq
    %v625 = vshrl.u32 %v624, 7
    %v626 = vsub.s32 %v150, %v625
    %v627 = vrot.slane %v568, %v626
    %v628 = vlaneseq
    %v629 = vshrl.u32 %v628, 7
    %v630 = vsub.s32 %v150, %v629
    %v631 = vrot.slane %v571, %v630
    %v632 = vlaneseq
    %v633 = vshrl.u32 %v632, 7
    %v634 = vsub.s32 %v150, %v633
    %v635 = vrot.slane %v574, %v634
    %v636 = vlaneseq
    %v637 = vshrl.u32 %v636, 7
    %v638 = vsub.s32 %v150, %v637
    %v639 = vrot.slane %v577, %v638
    %v640 = vlaneseq
    %v641 = vshrl.u32 %v640, 7
    %v642 = vsub.s32 %v150, %v641
    %v643 = vrot.slane %v580, %v642
    %v644 = vlaneseq
    %v645 = vshrl.u32 %v644, 7
    %v646 = vsub.s32 %v150, %v645
    %v647 = vrot.slane %v583, %v646
    %v648 = vsel %vm183, %v591, %v587
    %v649 = vsel %vm185, %v595, %v648
    %v650 = vsel %vm187, %v599, %v649
    %v651 = vsel %vm415, %v603, %v650
    %v652 = vsel %vm417, %v607, %v651
    %v653 = vsel %vm419, %v611, %v652
    %v654 = vsel %vm421, %v615, %v653
    %v655 = vsel %vm183, %v623, %v619
    %v656 = vsel %vm185, %v627, %v655
    %v657 = vsel %vm187, %v631, %v656
    %v658 = vsel %vm415, %v635, %v657
    %v659 = vsel %vm417, %v639, %v658
    %v660 = vsel %vm419, %v643, %v659
    %v661 = vsel %vm421, %v647, %v660
    %v664 = vsel %vm432, %v654, 0.0
    %665 = vadd.xlane.f32.xlu0 %v664
    %v666 = vpop.xlane.xlu0 %665
    %v667 = vsel %vm432, %v661, 0.0
    %668 = vadd.xlane.f32.xlu0 %v667
    %v669 = vpop.xlane.xlu0 %668
    %v670 = vmax.f32 %v435, %v666
    %v671 = vmax.f32 %v438, %v669
    %v672 = vsub.f32 %v435, %v670
    %v673 = vsub.f32 %v438, %v671
    %v674 = vmul.f32 %v672, 1.442695
    %v675 = vpow.pop %v674
    %v676 = vmul.f32 %v673, 1.442695
    %v677 = vpow.pop %v676
    %v678 = vsub.f32 %v666, %v670
    %v679 = vsub.f32 %v669, %v671
    %v680 = vmul.f32 %v678, 1.442695
    %v681 = vpow.pop %v680
    %v682 = vmul.f32 %v679, 1.442695
    %v683 = vpow.pop %v682
    %v684 = vadd.f32 %v675, %v681
    %v685 = vadd.f32 %v677, %v683
    %v686 = vrcp.pop %v684
    %v687 = vmul.f32 %v675, %v686
    %v688 = vrcp.pop %v685
    %v689 = vmul.f32 %v677, %v688
    %v690 = vmul.f32 %v681, %v686
    %v691 = vmul.f32 %v683, %v688
    %v692 = vmul.f32 %v46, %v687
    %v693 = vmul.f32 %v47, %v687
    %v694 = vmul.f32 %v48, %v689
    %v695 = vmul.f32 %v49, %v689
    %v696 = vmul.f32 %v59, %v690
    %v697 = vmul.f32 %v60, %v690
    %v698 = vmul.f32 %v61, %v691
    %v699 = vmul.f32 %v62, %v691
    %v700 = vadd.f32 %v692, %v696
    %v701 = vadd.f32 %v693, %v697
    %v702 = vadd.f32 %v694, %v698
    %v703 = vadd.f32 %v695, %v699
    %704 = vst [vmem:[#allocation7] sm:$0xff] %v700
    %705 = vst [vmem:[#allocation7 + $0x8] sm:$0xff] %v701
    %706 = vst [vmem:[#allocation7 + $0x10] sm:$0xff] %v702
    %707 = vst [vmem:[#allocation7 + $0x18] sm:$0xff] %v703
    // Predicated region
    $region26: #{tpu_custom_call.1} parent=1 // pred_check
      _
    $region27: #{tpu_custom_call.1} parent=1 // pred_check_branch
      %709 = sbr.rel (0) target = $region29
    $region28: #{tpu_custom_call.1} parent=1 // pred_region
      %s711 = ssub.s32 512, 512
      %712 = vsyncadd [#allocation4], %s711
      %s713 = sshll.u32 [#allocation7], 4
      %s714 = int_to_ptr.vmem [resolvable:$true] %s713
      %719 = dma.vmem_to_hbm [thread:$0]  %s714, 512, %s4, [#allocation4], 256, 256, 16
    $region29: #{tpu_custom_call.1} parent=1 // pred_fallthru
      _
    // Predicated region
    $region30: #{tpu_custom_call.1} parent=1 // pred_check
      _
    $region31: #{tpu_custom_call.1} parent=1 // pred_check_branch
      %721 = sbr.rel (0) target = $region33
    $region32: #{tpu_custom_call.1} parent=1 // pred_region
      %722 = dma.done [#allocation4], 512
    $region33: #{tpu_custom_call.1} parent=1 // pred_fallthru
      _
    %723 = vsyncpa [#allocation3], 1
    %724 = vsyncpa [#allocation6], 1
    %725 = vsyncpa [#allocation4], 1

</llo_original>
